<compile_context>
chip_gen: v5e
topology: v5e:2x2
jax: 0.10.0
libtpu: 0.0.40
codegen_flags: <defaults>
</compile_context>

<pallas_src>
import functools

import jax
import jax.numpy as jnp
from jax.experimental import pallas as pl
from jax.experimental.pallas import tpu as pltpu


def _l1_loss_kernel(k_actual, indy_ref, indx_ref, feat_ref, mask_ref, tgt_ref,
                    out_ref, pred_ref):
    b = pl.program_id(0)
    C, H, W = feat_ref.shape

    # Zero the prediction scratch so padded lanes (k >= k_actual) are finite;
    # mask is zero there, so they contribute 0 to both partial sums.
    pred_ref[...] = jnp.zeros_like(pred_ref)

    # Loop-invariant lane iota, hoisted out of the gather loop.
    lane_iota = jax.lax.broadcasted_iota(jnp.int32, (1, 1, W), 2)

    # Fully unrolled gather: k is a Python int, so the pred-scratch lane index
    # is static and every iteration is an independent short chain the scheduler
    # can overlap (SMEM scalar read -> dynamic sublane slice -> lane select).
    for k in range(k_actual):
        y = indy_ref[b, k]                                   # SMEM scalar
        x = indx_ref[b, k]                                   # SMEM scalar
        row = feat_ref[:, pl.ds(y, 1), :]                    # (C, 1, W) native dtype
        sel = jnp.where(lane_iota == x, row, jnp.zeros_like(row))
        val = jnp.sum(sel, axis=2).astype(jnp.float32)       # (C, 1) f32
        pred_ref[:, k:k + 1] = val                           # static single-lane store

    pred = pred_ref[...]                          # (C, K_pad) f32
    m = mask_ref[...].astype(jnp.float32)         # (1, K_pad)
    t = tgt_ref[...]                              # (C, K_pad) f32

    # Exact reference formula: |pred*m - t*m| (robust to any mask values).
    diff = jnp.abs(pred * m - t * m)              # (C, K_pad)

    # Lane-dense per-batch partials; final tiny reduction happens in the wrapper.
    out_ref[0:1, :] = jnp.sum(diff, axis=0, keepdims=True)   # numerator partials
    out_ref[1:2, :] = m * float(C)                           # denominator partials


def l1_loss(output, mask, ind, target):
    """Pallas equivalent of L1Loss.forward(output, mask, ind, target)."""
    B, C, H, W = output.shape
    K = ind.shape[1]
    K_pad = ((K + 127) // 128) * 128
    K_pad = max(K_pad, 128)

    # Cheap wrapper-side glue (no feature-map transpose / upcast):
    ind_i = jnp.clip(ind.astype(jnp.int32), 0, H * W - 1)    # guard OOB gather
    ind_y = ind_i // W                                       # (B, K) spatial row
    ind_x = ind_i % W                                        # (B, K) spatial col

    mask_f = jnp.zeros((B, 1, K_pad), jnp.float32)
    mask_f = mask_f.at[:, 0, :K].set(mask.astype(jnp.float32))
    tgt = jnp.zeros((B, C, K_pad), jnp.float32)
    tgt = tgt.at[:, :, :K].set(jnp.swapaxes(target.astype(jnp.float32), 1, 2))

    partials = pl.pallas_call(
        functools.partial(_l1_loss_kernel, K),
        out_shape=jax.ShapeDtypeStruct((B, 2, K_pad), jnp.float32),
        grid_spec=pltpu.PrefetchScalarGridSpec(
            num_scalar_prefetch=2,              # ind_y, ind_x -> SMEM
            grid=(B,),
            in_specs=[
                pl.BlockSpec((None, C, H, W), lambda b, iy, ix: (b, 0, 0, 0)),   # feat (native dtype)
                pl.BlockSpec((None, 1, K_pad), lambda b, iy, ix: (b, 0, 0)),     # mask (1, K_pad)
                pl.BlockSpec((None, C, K_pad), lambda b, iy, ix: (b, 0, 0)),     # target (C, K_pad)
            ],
            out_specs=pl.BlockSpec((None, 2, K_pad), lambda b, iy, ix: (b, 0, 0)),
            scratch_shapes=[
                pltpu.VMEM((C, K_pad), jnp.float32),   # gathered prediction columns
            ],
        ),
        compiler_params=pltpu.CompilerParams(
            dimension_semantics=("parallel",)),
    )(ind_y, ind_x, output, mask_f, tgt)

    num = jnp.sum(partials[:, 0, :])
    den = jnp.sum(partials[:, 1, :])
    return num / (den + 1e-4)


def _l1_loss_ref(output, mask, ind, target):
    """Pure-JAX reference mirroring the PyTorch module."""
    B, C, H, W = output.shape
    feat = jnp.transpose(output, (0, 2, 3, 1)).reshape(B, H * W, C)
    pred = jnp.take_along_axis(feat, ind[:, :, None].astype(jnp.int32), axis=1)
    m = mask[:, :, None].astype(jnp.float32) * jnp.ones_like(pred)
    num = jnp.sum(jnp.abs(pred * m - target * m))
    return num / (jnp.sum(m) + 0.0001)


if __name__ == "__main__":
    B, C, H, W, K = 2, 4, 16, 16, 8
    key = jax.random.PRNGKey(0)
    k1, k2, k3, k4 = jax.random.split(key, 4)

    output = jax.random.normal(k1, (B, C, H, W), dtype=jnp.float32)
    ind = jax.random.randint(k2, (B, K), 0, H * W, dtype=jnp.int32)
    mask = (jax.random.uniform(k3, (B, K)) < 0.7).astype(jnp.float32)
    target = jax.random.normal(k4, (B, K, C), dtype=jnp.float32)

    loss = l1_loss(output, mask, ind, target)
    jax.block_until_ready(loss)

    ref = _l1_loss_ref(output, mask, ind, target)
    assert jnp.allclose(loss, ref, rtol=1e-5, atol=1e-5), (loss, ref)

    print("KERNEL_OK")
</pallas_src>

<mosaic_0001>
module attributes {stable_mosaic.version = 11 : i64} {
  func.func @_l1_loss_kernel(%arg0: i32, %arg1: memref<2x8xi32, #tpu.memory_space<smem>>, %arg2: memref<2x8xi32, #tpu.memory_space<smem>>, %arg3: memref<1x4x16x16xf32, #tpu.memory_space<vmem>>, %arg4: memref<1x1x128xf32, #tpu.memory_space<vmem>>, %arg5: memref<1x4x128xf32, #tpu.memory_space<vmem>>, %arg6: memref<1x2x128xf32, #tpu.memory_space<vmem>>, %arg7: memref<4x128xf32, #tpu.memory_space<vmem>>) attributes {dimension_semantics = [#tpu.dimension_semantics<parallel>], iteration_bounds = array<i64: 2>, scalar_prefetch = 2 : i64, scratch_operands = 1 : i64, tpu.core_type = #tpu.core_type<tc>, window_params = [{transform_indices = @transform_0, window_bounds = array<i64: 1, 4, 16, 16>}, {transform_indices = @transform_1, window_bounds = array<i64: 1, 1, 128>}, {transform_indices = @transform_2, window_bounds = array<i64: 1, 4, 128>}, {transform_indices = @transform_3, window_bounds = array<i64: 1, 2, 128>}]} {
    %cst = arith.constant 0.000000e+00 : f32
    %0 = vector.broadcast %cst : f32 to vector<4x128xf32>
    %c0 = arith.constant 0 : index
    %c0_0 = arith.constant 0 : index
    %1 = vector.load %arg7[%c0, %c0_0] : memref<4x128xf32, #tpu.memory_space<vmem>>, vector<4x128xf32>
    tpu.vector_store %arg7[%c0, %c0_0], %0 {strides = array<i32>} : memref<4x128xf32, #tpu.memory_space<vmem>>, vector<4x128xf32>,
    %2 = tpu.iota {dimensions = array<i32: 2>} : vector<1x1x16xi32>
    %3 = arith.index_cast %arg0 : i32 to index
    %c0_1 = arith.constant 0 : index
    %4 = memref.load %arg1[%3, %c0_1] : memref<2x8xi32, #tpu.memory_space<smem>>
    %5 = arith.index_cast %arg0 : i32 to index
    %c0_2 = arith.constant 0 : index
    %6 = memref.load %arg2[%5, %c0_2] : memref<2x8xi32, #tpu.memory_space<smem>>
    %c0_3 = arith.constant 0 : index
    %c0_4 = arith.constant 0 : index
    %7 = arith.index_cast %4 : i32 to index
    %c0_5 = arith.constant 0 : index
    %8 = vector.load %arg3[%c0_3, %c0_4, %7, %c0_5] : memref<1x4x16x16xf32, #tpu.memory_space<vmem>>, vector<1x4x1x16xf32>
    %9 = vector.shape_cast %8 : vector<1x4x1x16xf32> to vector<4x1x16xf32>
    %10 = vector.broadcast %6 : i32 to vector<1x1x16xi32>
    %11 = arith.cmpi eq, %2, %10 : vector<1x1x16xi32>
    %cst_6 = arith.constant 0.000000e+00 : f32
    %12 = vector.broadcast %cst_6 : f32 to vector<4x1x16xf32>
    %13 = vector.shape_cast %11 : vector<1x1x16xi1> to vector<1x1x16xi1>
    %14 = vector.broadcast %13 : vector<1x1x16xi1> to vector<4x1x16xi1>
    %15 = arith.select %14, %9, %12 : vector<4x1x16xi1>, vector<4x1x16xf32>
    %cst_7 = arith.constant dense<0.000000e+00> : vector<4x1xf32>
    %16 = vector.multi_reduction <add>, %15, %cst_7 [2] : vector<4x1x16xf32> to vector<4x1xf32>
    %c0_8 = arith.constant 0 : index
    %c0_9 = arith.constant 0 : index
    %17 = vector.load %arg7[%c0_8, %c0_9] : memref<4x128xf32, #tpu.memory_space<vmem>>, vector<4x1xf32>
    tpu.vector_store %arg7[%c0_8, %c0_9], %16 {strides = array<i32>} : memref<4x128xf32, #tpu.memory_space<vmem>>, vector<4x1xf32>,
    %18 = arith.index_cast %arg0 : i32 to index
    %c1 = arith.constant 1 : index
    %19 = memref.load %arg1[%18, %c1] : memref<2x8xi32, #tpu.memory_space<smem>>
    %20 = arith.index_cast %arg0 : i32 to index
    %c1_10 = arith.constant 1 : index
    %21 = memref.load %arg2[%20, %c1_10] : memref<2x8xi32, #tpu.memory_space<smem>>
    %c0_11 = arith.constant 0 : index
    %c0_12 = arith.constant 0 : index
    %22 = arith.index_cast %19 : i32 to index
    %c0_13 = arith.constant 0 : index
    %23 = vector.load %arg3[%c0_11, %c0_12, %22, %c0_13] : memref<1x4x16x16xf32, #tpu.memory_space<vmem>>, vector<1x4x1x16xf32>
    %24 = vector.shape_cast %23 : vector<1x4x1x16xf32> to vector<4x1x16xf32>
    %25 = vector.broadcast %21 : i32 to vector<1x1x16xi32>
    %26 = arith.cmpi eq, %2, %25 : vector<1x1x16xi32>
    %cst_14 = arith.constant 0.000000e+00 : f32
    %27 = vector.broadcast %cst_14 : f32 to vector<4x1x16xf32>
    %28 = vector.shape_cast %26 : vector<1x1x16xi1> to vector<1x1x16xi1>
    %29 = vector.broadcast %28 : vector<1x1x16xi1> to vector<4x1x16xi1>
    %30 = arith.select %29, %24, %27 : vector<4x1x16xi1>, vector<4x1x16xf32>
    %cst_15 = arith.constant dense<0.000000e+00> : vector<4x1xf32>
    %31 = vector.multi_reduction <add>, %30, %cst_15 [2] : vector<4x1x16xf32> to vector<4x1xf32>
    %c0_16 = arith.constant 0 : index
    %c1_17 = arith.constant 1 : index
    %32 = vector.load %arg7[%c0_16, %c1_17] : memref<4x128xf32, #tpu.memory_space<vmem>>, vector<4x1xf32>
    tpu.vector_store %arg7[%c0_16, %c1_17], %31 {strides = array<i32>} : memref<4x128xf32, #tpu.memory_space<vmem>>, vector<4x1xf32>,
    %33 = arith.index_cast %arg0 : i32 to index
    %c2 = arith.constant 2 : index
    %34 = memref.load %arg1[%33, %c2] : memref<2x8xi32, #tpu.memory_space<smem>>
    %35 = arith.index_cast %arg0 : i32 to index
    %c2_18 = arith.constant 2 : index
    %36 = memref.load %arg2[%35, %c2_18] : memref<2x8xi32, #tpu.memory_space<smem>>
    %c0_19 = arith.constant 0 : index
    %c0_20 = arith.constant 0 : index
    %37 = arith.index_cast %34 : i32 to index
    %c0_21 = arith.constant 0 : index
    %38 = vector.load %arg3[%c0_19, %c0_20, %37, %c0_21] : memref<1x4x16x16xf32, #tpu.memory_space<vmem>>, vector<1x4x1x16xf32>
    %39 = vector.shape_cast %38 : vector<1x4x1x16xf32> to vector<4x1x16xf32>
    %40 = vector.broadcast %36 : i32 to vector<1x1x16xi32>
    %41 = arith.cmpi eq, %2, %40 : vector<1x1x16xi32>
    %cst_22 = arith.constant 0.000000e+00 : f32
    %42 = vector.broadcast %cst_22 : f32 to vector<4x1x16xf32>
    %43 = vector.shape_cast %41 : vector<1x1x16xi1> to vector<1x1x16xi1>
    %44 = vector.broadcast %43 : vector<1x1x16xi1> to vector<4x1x16xi1>
    %45 = arith.select %44, %39, %42 : vector<4x1x16xi1>, vector<4x1x16xf32>
    %cst_23 = arith.constant dense<0.000000e+00> : vector<4x1xf32>
    %46 = vector.multi_reduction <add>, %45, %cst_23 [2] : vector<4x1x16xf32> to vector<4x1xf32>
    %c0_24 = arith.constant 0 : index
    %c2_25 = arith.constant 2 : index
    %47 = vector.load %arg7[%c0_24, %c2_25] : memref<4x128xf32, #tpu.memory_space<vmem>>, vector<4x1xf32>
    tpu.vector_store %arg7[%c0_24, %c2_25], %46 {strides = array<i32>} : memref<4x128xf32, #tpu.memory_space<vmem>>, vector<4x1xf32>,
    %48 = arith.index_cast %arg0 : i32 to index
    %c3 = arith.constant 3 : index
    %49 = memref.load %arg1[%48, %c3] : memref<2x8xi32, #tpu.memory_space<smem>>
    %50 = arith.index_cast %arg0 : i32 to index
    %c3_26 = arith.constant 3 : index
    %51 = memref.load %arg2[%50, %c3_26] : memref<2x8xi32, #tpu.memory_space<smem>>
    %c0_27 = arith.constant 0 : index
    %c0_28 = arith.constant 0 : index
    %52 = arith.index_cast %49 : i32 to index
    %c0_29 = arith.constant 0 : index
    %53 = vector.load %arg3[%c0_27, %c0_28, %52, %c0_29] : memref<1x4x16x16xf32, #tpu.memory_space<vmem>>, vector<1x4x1x16xf32>
    %54 = vector.shape_cast %53 : vector<1x4x1x16xf32> to vector<4x1x16xf32>
    %55 = vector.broadcast %51 : i32 to vector<1x1x16xi32>
    %56 = arith.cmpi eq, %2, %55 : vector<1x1x16xi32>
    %cst_30 = arith.constant 0.000000e+00 : f32
    %57 = vector.broadcast %cst_30 : f32 to vector<4x1x16xf32>
    %58 = vector.shape_cast %56 : vector<1x1x16xi1> to vector<1x1x16xi1>
    %59 = vector.broadcast %58 : vector<1x1x16xi1> to vector<4x1x16xi1>
    %60 = arith.select %59, %54, %57 : vector<4x1x16xi1>, vector<4x1x16xf32>
    %cst_31 = arith.constant dense<0.000000e+00> : vector<4x1xf32>
    %61 = vector.multi_reduction <add>, %60, %cst_31 [2] : vector<4x1x16xf32> to vector<4x1xf32>
    %c0_32 = arith.constant 0 : index
    %c3_33 = arith.constant 3 : index
    %62 = vector.load %arg7[%c0_32, %c3_33] : memref<4x128xf32, #tpu.memory_space<vmem>>, vector<4x1xf32>
    tpu.vector_store %arg7[%c0_32, %c3_33], %61 {strides = array<i32>} : memref<4x128xf32, #tpu.memory_space<vmem>>, vector<4x1xf32>,
    %63 = arith.index_cast %arg0 : i32 to index
    %c4 = arith.constant 4 : index
    %64 = memref.load %arg1[%63, %c4] : memref<2x8xi32, #tpu.memory_space<smem>>
    %65 = arith.index_cast %arg0 : i32 to index
    %c4_34 = arith.constant 4 : index
    %66 = memref.load %arg2[%65, %c4_34] : memref<2x8xi32, #tpu.memory_space<smem>>
    %c0_35 = arith.constant 0 : index
    %c0_36 = arith.constant 0 : index
    %67 = arith.index_cast %64 : i32 to index
    %c0_37 = arith.constant 0 : index
    %68 = vector.load %arg3[%c0_35, %c0_36, %67, %c0_37] : memref<1x4x16x16xf32, #tpu.memory_space<vmem>>, vector<1x4x1x16xf32>
    %69 = vector.shape_cast %68 : vector<1x4x1x16xf32> to vector<4x1x16xf32>
    %70 = vector.broadcast %66 : i32 to vector<1x1x16xi32>
    %71 = arith.cmpi eq, %2, %70 : vector<1x1x16xi32>
    %cst_38 = arith.constant 0.000000e+00 : f32
    %72 = vector.broadcast %cst_38 : f32 to vector<4x1x16xf32>
    %73 = vector.shape_cast %71 : vector<1x1x16xi1> to vector<1x1x16xi1>
    %74 = vector.broadcast %73 : vector<1x1x16xi1> to vector<4x1x16xi1>
    %75 = arith.select %74, %69, %72 : vector<4x1x16xi1>, vector<4x1x16xf32>
    %cst_39 = arith.constant dense<0.000000e+00> : vector<4x1xf32>
    %76 = vector.multi_reduction <add>, %75, %cst_39 [2] : vector<4x1x16xf32> to vector<4x1xf32>
    %c0_40 = arith.constant 0 : index
    %c4_41 = arith.constant 4 : index
    %77 = vector.load %arg7[%c0_40, %c4_41] : memref<4x128xf32, #tpu.memory_space<vmem>>, vector<4x1xf32>
    tpu.vector_store %arg7[%c0_40, %c4_41], %76 {strides = array<i32>} : memref<4x128xf32, #tpu.memory_space<vmem>>, vector<4x1xf32>,
    %78 = arith.index_cast %arg0 : i32 to index
    %c5 = arith.constant 5 : index
    %79 = memref.load %arg1[%78, %c5] : memref<2x8xi32, #tpu.memory_space<smem>>
    %80 = arith.index_cast %arg0 : i32 to index
    %c5_42 = arith.constant 5 : index
    %81 = memref.load %arg2[%80, %c5_42] : memref<2x8xi32, #tpu.memory_space<smem>>
    %c0_43 = arith.constant 0 : index
    %c0_44 = arith.constant 0 : index
    %82 = arith.index_cast %79 : i32 to index
    %c0_45 = arith.constant 0 : index
    %83 = vector.load %arg3[%c0_43, %c0_44, %82, %c0_45] : memref<1x4x16x16xf32, #tpu.memory_space<vmem>>, vector<1x4x1x16xf32>
    %84 = vector.shape_cast %83 : vector<1x4x1x16xf32> to vector<4x1x16xf32>
    %85 = vector.broadcast %81 : i32 to vector<1x1x16xi32>
    %86 = arith.cmpi eq, %2, %85 : vector<1x1x16xi32>
    %cst_46 = arith.constant 0.000000e+00 : f32
    %87 = vector.broadcast %cst_46 : f32 to vector<4x1x16xf32>
    %88 = vector.shape_cast %86 : vector<1x1x16xi1> to vector<1x1x16xi1>
    %89 = vector.broadcast %88 : vector<1x1x16xi1> to vector<4x1x16xi1>
    %90 = arith.select %89, %84, %87 : vector<4x1x16xi1>, vector<4x1x16xf32>
    %cst_47 = arith.constant dense<0.000000e+00> : vector<4x1xf32>
    %91 = vector.multi_reduction <add>, %90, %cst_47 [2] : vector<4x1x16xf32> to vector<4x1xf32>
    %c0_48 = arith.constant 0 : index
    %c5_49 = arith.constant 5 : index
    %92 = vector.load %arg7[%c0_48, %c5_49] : memref<4x128xf32, #tpu.memory_space<vmem>>, vector<4x1xf32>
    tpu.vector_store %arg7[%c0_48, %c5_49], %91 {strides = array<i32>} : memref<4x128xf32, #tpu.memory_space<vmem>>, vector<4x1xf32>,
    %93 = arith.index_cast %arg0 : i32 to index
    %c6 = arith.constant 6 : index
    %94 = memref.load %arg1[%93, %c6] : memref<2x8xi32, #tpu.memory_space<smem>>
    %95 = arith.index_cast %arg0 : i32 to index
    %c6_50 = arith.constant 6 : index
    %96 = memref.load %arg2[%95, %c6_50] : memref<2x8xi32, #tpu.memory_space<smem>>
    %c0_51 = arith.constant 0 : index
    %c0_52 = arith.constant 0 : index
    %97 = arith.index_cast %94 : i32 to index
    %c0_53 = arith.constant 0 : index
    %98 = vector.load %arg3[%c0_51, %c0_52, %97, %c0_53] : memref<1x4x16x16xf32, #tpu.memory_space<vmem>>, vector<1x4x1x16xf32>
    %99 = vector.shape_cast %98 : vector<1x4x1x16xf32> to vector<4x1x16xf32>
    %100 = vector.broadcast %96 : i32 to vector<1x1x16xi32>
    %101 = arith.cmpi eq, %2, %100 : vector<1x1x16xi32>
    %cst_54 = arith.constant 0.000000e+00 : f32
    %102 = vector.broadcast %cst_54 : f32 to vector<4x1x16xf32>
    %103 = vector.shape_cast %101 : vector<1x1x16xi1> to vector<1x1x16xi1>
    %104 = vector.broadcast %103 : vector<1x1x16xi1> to vector<4x1x16xi1>
    %105 = arith.select %104, %99, %102 : vector<4x1x16xi1>, vector<4x1x16xf32>
    %cst_55 = arith.constant dense<0.000000e+00> : vector<4x1xf32>
    %106 = vector.multi_reduction <add>, %105, %cst_55 [2] : vector<4x1x16xf32> to vector<4x1xf32>
    %c0_56 = arith.constant 0 : index
    %c6_57 = arith.constant 6 : index
    %107 = vector.load %arg7[%c0_56, %c6_57] : memref<4x128xf32, #tpu.memory_space<vmem>>, vector<4x1xf32>
    tpu.vector_store %arg7[%c0_56, %c6_57], %106 {strides = array<i32>} : memref<4x128xf32, #tpu.memory_space<vmem>>, vector<4x1xf32>,
    %108 = arith.index_cast %arg0 : i32 to index
    %c7 = arith.constant 7 : index
    %109 = memref.load %arg1[%108, %c7] : memref<2x8xi32, #tpu.memory_space<smem>>
    %110 = arith.index_cast %arg0 : i32 to index
    %c7_58 = arith.constant 7 : index
    %111 = memref.load %arg2[%110, %c7_58] : memref<2x8xi32, #tpu.memory_space<smem>>
    %c0_59 = arith.constant 0 : index
    %c0_60 = arith.constant 0 : index
    %112 = arith.index_cast %109 : i32 to index
    %c0_61 = arith.constant 0 : index
    %113 = vector.load %arg3[%c0_59, %c0_60, %112, %c0_61] : memref<1x4x16x16xf32, #tpu.memory_space<vmem>>, vector<1x4x1x16xf32>
    %114 = vector.shape_cast %113 : vector<1x4x1x16xf32> to vector<4x1x16xf32>
    %115 = vector.broadcast %111 : i32 to vector<1x1x16xi32>
    %116 = arith.cmpi eq, %2, %115 : vector<1x1x16xi32>
    %cst_62 = arith.constant 0.000000e+00 : f32
    %117 = vector.broadcast %cst_62 : f32 to vector<4x1x16xf32>
    %118 = vector.shape_cast %116 : vector<1x1x16xi1> to vector<1x1x16xi1>
    %119 = vector.broadcast %118 : vector<1x1x16xi1> to vector<4x1x16xi1>
    %120 = arith.select %119, %114, %117 : vector<4x1x16xi1>, vector<4x1x16xf32>
    %cst_63 = arith.constant dense<0.000000e+00> : vector<4x1xf32>
    %121 = vector.multi_reduction <add>, %120, %cst_63 [2] : vector<4x1x16xf32> to vector<4x1xf32>
    %c0_64 = arith.constant 0 : index
    %c7_65 = arith.constant 7 : index
    %122 = vector.load %arg7[%c0_64, %c7_65] : memref<4x128xf32, #tpu.memory_space<vmem>>, vector<4x1xf32>
    tpu.vector_store %arg7[%c0_64, %c7_65], %121 {strides = array<i32>} : memref<4x128xf32, #tpu.memory_space<vmem>>, vector<4x1xf32>,
    %c0_66 = arith.constant 0 : index
    %c0_67 = arith.constant 0 : index
    %123 = vector.load %arg7[%c0_66, %c0_67] : memref<4x128xf32, #tpu.memory_space<vmem>>, vector<4x128xf32>
    %c0_68 = arith.constant 0 : index
    %c0_69 = arith.constant 0 : index
    %c0_70 = arith.constant 0 : index
    %124 = vector.load %arg4[%c0_68, %c0_69, %c0_70] : memref<1x1x128xf32, #tpu.memory_space<vmem>>, vector<1x1x128xf32>
    %125 = vector.shape_cast %124 : vector<1x1x128xf32> to vector<1x128xf32>
    %c0_71 = arith.constant 0 : index
    %c0_72 = arith.constant 0 : index
    %c0_73 = arith.constant 0 : index
    %126 = vector.load %arg5[%c0_71, %c0_72, %c0_73] : memref<1x4x128xf32, #tpu.memory_space<vmem>>, vector<1x4x128xf32>
    %127 = vector.shape_cast %126 : vector<1x4x128xf32> to vector<4x128xf32>
    %128 = vector.broadcast %125 : vector<1x128xf32> to vector<4x128xf32>
    %129 = arith.mulf %123, %128 : vector<4x128xf32>
    %130 = vector.broadcast %125 : vector<1x128xf32> to vector<4x128xf32>
    %131 = arith.mulf %127, %130 : vector<4x128xf32>
    %132 = arith.subf %129, %131 : vector<4x128xf32>
    %133 = math.absf %132 : vector<4x128xf32>
    %cst_74 = arith.constant dense<0.000000e+00> : vector<128xf32>
    %134 = vector.multi_reduction <add>, %133, %cst_74 [0] : vector<4x128xf32> to vector<128xf32>
    %135 = vector.shape_cast %134 : vector<128xf32> to vector<1x128xf32>
    %c0_75 = arith.constant 0 : index
    %c0_76 = arith.constant 0 : index
    %c0_77 = arith.constant 0 : index
    %136 = vector.load %arg6[%c0_75, %c0_76, %c0_77] : memref<1x2x128xf32, #tpu.memory_space<vmem>>, vector<1x1x128xf32>
    %137 = vector.shape_cast %136 : vector<1x1x128xf32> to vector<1x128xf32>
    %138 = vector.shape_cast %135 : vector<1x128xf32> to vector<1x1x128xf32>
    tpu.vector_store %arg6[%c0_75, %c0_76, %c0_77], %138 {strides = array<i32>} : memref<1x2x128xf32, #tpu.memory_space<vmem>>, vector<1x1x128xf32>,
    %cst_78 = arith.constant 4.000000e+00 : f32
    %139 = vector.broadcast %cst_78 : f32 to vector<1x128xf32>
    %140 = arith.mulf %125, %139 : vector<1x128xf32>
    %c0_79 = arith.constant 0 : index
    %c1_80 = arith.constant 1 : index
    %c0_81 = arith.constant 0 : index
    %141 = vector.load %arg6[%c0_79, %c1_80, %c0_81] : memref<1x2x128xf32, #tpu.memory_space<vmem>>, vector<1x1x128xf32>
    %142 = vector.shape_cast %141 : vector<1x1x128xf32> to vector<1x128xf32>
    %143 = vector.shape_cast %140 : vector<1x128xf32> to vector<1x1x128xf32>
    tpu.vector_store %arg6[%c0_79, %c1_80, %c0_81], %143 {strides = array<i32>} : memref<1x2x128xf32, #tpu.memory_space<vmem>>, vector<1x1x128xf32>,
    return
  }
  func.func @transform_0(%arg0: i32, %arg1: memref<2x8xi32, #tpu.memory_space<smem>>, %arg2: memref<2x8xi32, #tpu.memory_space<smem>>) -> (i32, i32, i32, i32) {
    %c0_i32 = arith.constant 0 : i32
    %c0_i32_0 = arith.constant 0 : i32
    %c0_i32_1 = arith.constant 0 : i32
    %c0_i32_2 = arith.constant 0 : i32
    return %arg0, %c0_i32, %c0_i32_0, %c0_i32_1 : i32, i32, i32, i32
  }
  func.func @transform_1(%arg0: i32, %arg1: memref<2x8xi32, #tpu.memory_space<smem>>, %arg2: memref<2x8xi32, #tpu.memory_space<smem>>) -> (i32, i32, i32) {
    %c0_i32 = arith.constant 0 : i32
    %c0_i32_0 = arith.constant 0 : i32
    %c0_i32_1 = arith.constant 0 : i32
    return %arg0, %c0_i32, %c0_i32_0 : i32, i32, i32
  }
  func.func @transform_2(%arg0: i32, %arg1: memref<2x8xi32, #tpu.memory_space<smem>>, %arg2: memref<2x8xi32, #tpu.memory_space<smem>>) -> (i32, i32, i32) {
    %c0_i32 = arith.constant 0 : i32
    %c0_i32_0 = arith.constant 0 : i32
    %c0_i32_1 = arith.constant 0 : i32
    return %arg0, %c0_i32, %c0_i32_0 : i32, i32, i32
  }
  func.func @transform_3(%arg0: i32, %arg1: memref<2x8xi32, #tpu.memory_space<smem>>, %arg2: memref<2x8xi32, #tpu.memory_space<smem>>) -> (i32, i32, i32) {
    %c0_i32 = arith.constant 0 : i32
    %c0_i32_0 = arith.constant 0 : i32
    %c0_i32_1 = arith.constant 0 : i32
    return %arg0, %c0_i32, %c0_i32_0 : i32, i32, i32
  }
}

</mosaic_0001>

<llo_original>
// kernel: tpu_custom_call.1
$region0: #{tpu_custom_call.1}
  #allocation0 [shape = 'u32[]', space=smem, size = 0x4, offset = 0x4, fixed_abs, tag = 'smem constant byte address 0x4 - core index']
  #allocation1 [shape = 'u32[72,128]{1,0:T(1,128)}', space=vmem, size = 0x9000, scoped, tag = 'internal scratch']
  #allocation2 [shape = 'f32[4,128]{1,0:T(4,128)}', space=vmem, size = 0x800, scoped, tag = 'scratch operand']
  #allocation3 [shape = 's32[1]{0}', space=sflag, size = 0x4, scoped, tag = 'scoped memory for tpu_custom_call.1']
  #allocation4 [shape = 'u8[1024]{0}', space=smem, size = 0x400, scoped, tag = 'prefetched SMEM operand 0']
  #allocation5 [shape = 'u8[1024]{0}', space=smem, size = 0x400, scoped, tag = 'prefetched SMEM operand 1']
  %s0 = inlined_call_operand.hbm [shape: s32[2,8], index: 0, kind: input, shape index: {}]
  %s1 = inlined_call_operand.hbm [shape: s32[2,8], index: 1, kind: input, shape index: {}]
  %s2 = inlined_call_operand.hbm [shape: f32[2,4,16,16], index: 2, kind: input, shape index: {}]
  %s3 = inlined_call_operand.vmem [shape: f32[2,1,128], index: 3, kind: input, shape index: {}]
  %s4 = inlined_call_operand.hbm [shape: f32[2,4,128], index: 4, kind: input, shape index: {}]
  %s5 = inlined_call_operand.hbm [shape: f32[2,2,128], index: 5, kind: output, shape index: {}]
  %s6 = sld [smem:[#allocation0]]
  $region53: #{tpu_custom_call.1} parent=0
    _
  %s8 = ssub.s32 1, %s6
  %s9 = scalar_select 0, %s8, %s6
  %s11 = sshll.u32 %s0, 4
  %s12 = int_to_ptr.hbm [resolvable:$true] %s11
  %14 = dma.hbm_to_smem %s12, 32, [#allocation4], [#allocation3]
  %s16 = sshll.u32 %s1, 4
  %s17 = int_to_ptr.hbm [resolvable:$true] %s16
  %19 = dma.hbm_to_smem %s17, 32, [#allocation5], [#allocation3]
  %21 = dma.done [#allocation3], 64
  %22 = sfence
  $region1: #{tpu_custom_call.1} parent=0
    #allocation6 [shape = 'u8[65536]{0}', space=vmem, size = 0x10000, scoped, tag = 'input window, operand 2']
    #allocation7 [shape = 's32[2]{0}', space=sflag, size = 0x8, scoped, tag = 'scoped memory for tpu_custom_call.1']
    #allocation8 [shape = 's32[2]{0}', space=sflag, size = 0x8, scoped, tag = 'scoped memory for tpu_custom_call.1']
    #allocation9 [shape = 'u8[4096]{0}', space=vmem, size = 0x1000, scoped, tag = 'input window, operand 4']
    #allocation10 [shape = 's32[2]{0}', space=sflag, size = 0x8, scoped, tag = 'scoped memory for tpu_custom_call.1']
    #allocation11 [shape = 'u8[2048]{0}', space=vmem, size = 0x800, scoped, tag = 'output window, operand 0']
    %23 = vsyncpa [#allocation7], 0
    %s24 = scalar_lea.sflag [#allocation7], 1
    %25 = vsyncpa %s24, 0
    %26 = vsyncpa [#allocation10], 0
    %s27 = scalar_lea.sflag [#allocation10], 1
    %28 = vsyncpa %s27, 0
    %29 = vsyncpa [#allocation8], 0
    %s30 = scalar_lea.sflag [#allocation8], 1
    %31 = vsyncpa %s30, 0
    loop: start=0, step=1, limit=4
    $region2: #{tpu_custom_call.1} parent=1 // loop_pre_header
      _
    $region3: #{tpu_custom_call.1} parent=1 // loop_header
      %s33 = sphi 0, %s37
      %p34 = scmp.ge.s32.totalorder %s33, 4
      %s43 = sphi 0, %s45
      %s46 = sphi 0, %s43
      %s47 = sphi 0, %s46
      %s63 = sphi 0, %s47
      %s69 = sphi 0, %s71
      %s72 = sphi 0, %s69
      %s73 = sphi 0, %s72
      %s89 = sphi 0, %s73
      %s95 = sphi 0, %s97
      %s98 = sphi 0, %s95
      %s99 = sphi 0, %s98
      %s115 = sphi 0, %s99
      %s121 = sphi 0, %s123
      %s124 = sphi 0, %s121
      %s125 = sphi 0, %s124
      %s141 = sphi 0, %s125
    $region4: #{tpu_custom_call.1} parent=1 // loop_header_branch
      %36 = sbr.rel (%p34) target = $region8
    $region5: #{tpu_custom_call.1} parent=1 // loop_body
      %s38 = ssub.s32 %s33, 1
      %s39 = ssub.s32 %s33, 2
      %s40 = sadd.s32 %s33, 1
      %s41 = ssub.s32 %s33, %s40
      %p42 = scmp.eq.s32.totalorder %s41, 0
      %s44 = sadd.s32 %s43, 1
      %s45 = scalar_select %p42, %s43, %s44
      %p48 = pneg %p42
      %p49 = scmp.eq.s32.totalorder %s33, 1
      %p50 = por %p48, %p49
      %p51 = scmp.ne.s32.totalorder %s43, %s46
      %p52 = scmp.eq.s32.totalorder %s33, 0
      %p53 = por %p51, %p52
      %p54 = scmp.ne.s32.totalorder %s43, %s46
      %p55 = scmp.eq.s32.totalorder %s38, 1
      %p56 = por %p54, %p55
      %p57 = scmp.ne.s32.totalorder %s46, %s47
      %p58 = scmp.eq.s32.totalorder %s38, 0
      %p59 = por %p57, %p58
      %p60 = scmp.ne.s32.totalorder %s46, %s47
      %p61 = scmp.eq.s32.totalorder %s39, 1
      %p62 = por %p60, %p61
      %p64 = scmp.ne.s32.totalorder %s47, %s63
      %p65 = scmp.eq.s32.totalorder %s39, 0
      %p66 = por %p64, %p65
      %s67 = ssub.s32 %s33, %s40
      %p68 = scmp.eq.s32.totalorder %s67, 0
      %s70 = sadd.s32 %s69, 1
      %s71 = scalar_select %p68, %s69, %s70
      %p74 = pneg %p68
      %p75 = scmp.eq.s32.totalorder %s33, 1
      %p76 = por %p74, %p75
      %p77 = scmp.ne.s32.totalorder %s69, %s72
      %p78 = scmp.eq.s32.totalorder %s33, 0
      %p79 = por %p77, %p78
      %p80 = scmp.ne.s32.totalorder %s69, %s72
      %p81 = scmp.eq.s32.totalorder %s38, 1
      %p82 = por %p80, %p81
      %p83 = scmp.ne.s32.totalorder %s72, %s73
      %p84 = scmp.eq.s32.totalorder %s38, 0
      %p85 = por %p83, %p84
      %p86 = scmp.ne.s32.totalorder %s72, %s73
      %p87 = scmp.eq.s32.totalorder %s39, 1
      %p88 = por %p86, %p87
      %p90 = scmp.ne.s32.totalorder %s73, %s89
      %p91 = scmp.eq.s32.totalorder %s39, 0
      %p92 = por %p90, %p91
      %s93 = ssub.s32 %s33, %s40
      %p94 = scmp.eq.s32.totalorder %s93, 0
      %s96 = sadd.s32 %s95, 1
      %s97 = scalar_select %p94, %s95, %s96
      %p100 = pneg %p94
      %p101 = scmp.eq.s32.totalorder %s33, 1
      %p102 = por %p100, %p101
      %p103 = scmp.ne.s32.totalorder %s95, %s98
      %p104 = scmp.eq.s32.totalorder %s33, 0
      %p105 = por %p103, %p104
      %p106 = scmp.ne.s32.totalorder %s95, %s98
      %p107 = scmp.eq.s32.totalorder %s38, 1
      %p108 = por %p106, %p107
      %p109 = scmp.ne.s32.totalorder %s98, %s99
      %p110 = scmp.eq.s32.totalorder %s38, 0
      %p111 = por %p109, %p110
      %p112 = scmp.ne.s32.totalorder %s98, %s99
      %p113 = scmp.eq.s32.totalorder %s39, 1
      %p114 = por %p112, %p113
      %p116 = scmp.ne.s32.totalorder %s99, %s115
      %p117 = scmp.eq.s32.totalorder %s39, 0
      %p118 = por %p116, %p117
      %s119 = ssub.s32 %s33, %s40
      %p120 = scmp.eq.s32.totalorder %s119, 0
      %s122 = sadd.s32 %s121, 1
      %s123 = scalar_select %p120, %s121, %s122
      %p126 = pneg %p120
      %p127 = scmp.eq.s32.totalorder %s33, 1
      %p128 = por %p126, %p127
      %p129 = scmp.ne.s32.totalorder %s121, %s124
      %p130 = scmp.eq.s32.totalorder %s33, 0
      %p131 = por %p129, %p130
      %p132 = scmp.ne.s32.totalorder %s121, %s124
      %p133 = scmp.eq.s32.totalorder %s38, 1
      %p134 = por %p132, %p133
      %p135 = scmp.ne.s32.totalorder %s124, %s125
      %p136 = scmp.eq.s32.totalorder %s38, 0
      %p137 = por %p135, %p136
      %p138 = scmp.ne.s32.totalorder %s124, %s125
      %p139 = scmp.eq.s32.totalorder %s39, 1
      %p140 = por %p138, %p139
      %p142 = scmp.ne.s32.totalorder %s125, %s141
      %p143 = scmp.eq.s32.totalorder %s39, 0
      %p144 = por %p142, %p143
      %p145 = scmp.le.s32.totalorder 1, %s33
      %p146 = scmp.lt.s32.totalorder %s33, 3
      %p147 = pnand %p145, %p146
      %p148 = pneg %p147
      // Predicated region
      $region9: #{tpu_custom_call.1} parent=5 // pred_check
        _
      $region10: #{tpu_custom_call.1} parent=5 // pred_check_branch
        %150 = sbr.rel (%p147) target = $region12
      $region11: #{tpu_custom_call.1} parent=5 // pred_region
        %s151 = ssub.s32 %s33, 1
      $region12: #{tpu_custom_call.1} parent=5 // pred_fallthru
        _
      %p152 = scmp.lt.s32.totalorder %s33, 2
      // Predicated region
      $region13: #{tpu_custom_call.1} parent=5 // pred_check
        %p153 = pneg %p152
      $region14: #{tpu_custom_call.1} parent=5 // pred_check_branch
        %155 = sbr.rel (%p153) target = $region16
      $region15: #{tpu_custom_call.1} parent=5 // pred_region
        // Predicated region
        $region17: #{tpu_custom_call.1} parent=15 // pred_check
          %p156 = pneg %p53
        $region18: #{tpu_custom_call.1} parent=15 // pred_check_branch
          %158 = sbr.rel (%p156) target = $region20
        $region19: #{tpu_custom_call.1} parent=15 // pred_region
          %s159 = sand.u32 %s43, 1
          %s160 = scalar_lea.sflag [#allocation7], %s159
          %s161 = sand.u32 %s43, 1
          %s162 = smul.addr %s161, 64
          %s163 = scalar_lea.vmem [#allocation6], %s162
          %165 = vsyncadd %s160, 0
          %s166 = smul.addr %s33, 8
          %s167 = smul.addr %s166, 8
          %s168 = scalar_lea.hbm %s2, %s167
          %s169 = sshll.u32 %s168, 4
          %s170 = int_to_ptr.hbm [resolvable:$true] %s169
          %s171 = sshll.u32 %s163, 4
          %s172 = int_to_ptr.vmem [resolvable:$true] %s171
          %177 = dma.hbm_to_vmem [thread:$0]  %s170, 1024, %s172, %s160, 128, 128, 8
        $region20: #{tpu_custom_call.1} parent=15 // pred_fallthru
          _
        // Predicated region
        $region21: #{tpu_custom_call.1} parent=15 // pred_check
          %p178 = pneg %p79
        $region22: #{tpu_custom_call.1} parent=15 // pred_check_branch
          %180 = sbr.rel (%p178) target = $region24
        $region23: #{tpu_custom_call.1} parent=15 // pred_region
          %p181 = scmp.lt.s32.totalorder %s33, 1
          %s182 = scalar_select %p181, %s33, 1
          %s183 = scalar_lea.vmem %s3, %s182
        $region24: #{tpu_custom_call.1} parent=15 // pred_fallthru
          _
        // Predicated region
        $region25: #{tpu_custom_call.1} parent=15 // pred_check
          %p184 = pneg %p105
        $region26: #{tpu_custom_call.1} parent=15 // pred_check_branch
          %186 = sbr.rel (%p184) target = $region28
        $region27: #{tpu_custom_call.1} parent=15 // pred_region
          %s187 = sand.u32 %s95, 1
          %s188 = scalar_lea.sflag [#allocation10], %s187
          %s189 = sand.u32 %s95, 1
          %s190 = smul.addr %s189, 4
          %s191 = scalar_lea.vmem [#allocation9], %s190
          %193 = vsyncadd %s188, 0
          %s194 = smul.addr %s33, 4
          %s195 = scalar_lea.hbm %s4, %s194
          %s197 = sshll.u32 %s195, 4
          %s198 = int_to_ptr.hbm [resolvable:$true] %s197
          %s199 = sshll.u32 %s191, 4
          %s200 = int_to_ptr.vmem [resolvable:$true] %s199
          %202 = dma.hbm_to_vmem [thread:$0]  %s198, 64, %s200, %s188
        $region28: #{tpu_custom_call.1} parent=15 // pred_fallthru
          _
      $region16: #{tpu_custom_call.1} parent=5 // pred_fallthru
        _
      %p203 = scmp.le.s32.totalorder 1, %s33
      %p204 = scmp.lt.s32.totalorder %s33, 3
      %p205 = pnand %p203, %p204
      %p206 = pneg %p205
      // Predicated region
      $region29: #{tpu_custom_call.1} parent=5 // pred_check
        _
      $region30: #{tpu_custom_call.1} parent=5 // pred_check_branch
        %208 = sbr.rel (%p205) target = $region32
      $region31: #{tpu_custom_call.1} parent=5 // pred_region
        %s209 = ssub.s32 %s33, 1
        %s210 = sand.u32 %s46, 1
        %s211 = scalar_lea.sflag [#allocation7], %s210
        %s212 = sand.u32 %s46, 1
        %s213 = smul.addr %s212, 64
        %s214 = scalar_lea.vmem [#allocation6], %s213
        // Predicated region
        $region33: #{tpu_custom_call.1} parent=31 // pred_check
          %p215 = pneg %p59
        $region34: #{tpu_custom_call.1} parent=31 // pred_check_branch
          %217 = sbr.rel (%p215) target = $region36
        $region35: #{tpu_custom_call.1} parent=31 // pred_region
          %219 = dma.done %s211, 1024
        $region36: #{tpu_custom_call.1} parent=31 // pred_fallthru
          _
        %s220 = sand.u32 %s98, 1
        %s221 = scalar_lea.sflag [#allocation10], %s220
        %s222 = sand.u32 %s98, 1
        %s223 = smul.addr %s222, 4
        %s224 = scalar_lea.vmem [#allocation9], %s223
        // Predicated region
        $region37: #{tpu_custom_call.1} parent=31 // pred_check
          %p225 = pneg %p111
        $region38: #{tpu_custom_call.1} parent=31 // pred_check_branch
          %227 = sbr.rel (%p225) target = $region40
        $region39: #{tpu_custom_call.1} parent=31 // pred_region
          %229 = dma.done %s221, 64
        $region40: #{tpu_custom_call.1} parent=31 // pred_fallthru
          _
        %s230 = sand.u32 %s46, 1
        %s231 = scalar_lea.sflag [#allocation7], %s230
        %s232 = sand.u32 %s46, 1
        %s233 = smul.addr %s232, 64
        %s234 = scalar_lea.vmem [#allocation6], %s233
        %p235 = pneg %p59
        %p236 = pneg %p56
        %p237 = scmp.lt.s32.totalorder %s38, 1
        %s238 = scalar_select %p237, %s38, 1
        %s239 = scalar_lea.vmem %s3, %s238
        %p240 = pneg %p85
        %p241 = pneg %p82
        %s242 = sand.u32 %s98, 1
        %s243 = scalar_lea.sflag [#allocation10], %s242
        %s244 = sand.u32 %s98, 1
        %s245 = smul.addr %s244, 4
        %s246 = scalar_lea.vmem [#allocation9], %s245
        %p247 = pneg %p111
        %p248 = pneg %p108
        %p249 = pneg %p137
        %p250 = pneg %p134
        %s251 = sand.u32 %s124, 1
        %s252 = scalar_lea.sflag [#allocation8], %s251
        %s253 = sand.u32 %s124, 1
        %s254 = smul.addr %s253, 2
        %s255 = scalar_lea.vmem [#allocation11], %s254
        %p256 = scmp.lt.s32.totalorder %s38, 1
        %s257 = scalar_select %p256, %s38, 1
        %s258 = scalar_lea.vmem %s3, %s257
        %259 = vst [vmem:[#allocation2] sm:$0xf] 0.0
        %v260 = vlaneseq
        %v261 = vand.u32 %v260, 127
        %s262 = smul.u32 %s38, 128
        %s263 = sld [smem:[#allocation4 + %s262]]
        %s264 = sld [smem:[#allocation5 + %s262]]
        %s265 = scalar_lea.vmem %s214, %s263 [#allocation6]
        %v266 = vld [vmem:[%s265] sm:$0x1]
        %v267 = vld [vmem:[%s265 + $0x10] sm:$0x1]
        %v268 = vld [vmem:[%s265 + $0x20] sm:$0x1]
        %v269 = vld [vmem:[%s265 + $0x30] sm:$0x1]
        %v270 = vstv %s264
        %vm271 = vcmp.eq.s32.totalorder %v261, %v270
        %v272 = vsel %vm271, 1, 0
        %vm273 = vcmp.eq.s32.totalorder %v272, 1
        %v274 = vsel %vm273, %v266, 0.0
        %v275 = vsel %vm273, %v267, 0.0
        %v276 = vsel %vm273, %v268, 0.0
        %v277 = vsel %vm273, %v269, 0.0
        %vm278 = vcmask 122880
        %v279 = vsel %vm278, %v274, 0.0
        %280 = vadd.xlane.f32.xlu0 %v279
        %v281 = vpop.xlane.xlu0 %280
        %v282 = vsel %vm278, %v275, 0.0
        %283 = vadd.xlane.f32.xlu0 %v282
        %v284 = vpop.xlane.xlu0 %283
        %v285 = vsel %vm278, %v276, 0.0
        %286 = vadd.xlane.f32.xlu0 %v285
        %v287 = vpop.xlane.xlu0 %286
        %v288 = vsel %vm278, %v277, 0.0
        %289 = vadd.xlane.f32.xlu0 %v288
        %v290 = vpop.xlane.xlu0 %289
        %v295 = vrot.slane %v284, 7
        %vm296 = vcmask 1041409
        %v297 = vsel %vm296, %v295, %v281
        %v298 = vrot.slane %v287, 6
        %vm299 = vcmask 1042434
        %v300 = vsel %vm299, %v298, %v297
        %v301 = vrot.slane %v290, 5
        %vm302 = vcmask 1043459
        %v303 = vsel %vm302, %v301, %v300
        %vm305 = vcmask 3072
        %306 = vst.msk [vmem:[#allocation2] sm:$0xf] %vm305, %v303
        %s307 = sadd.s32 %s262, 1
        %s308 = sld [smem:[#allocation4 + %s307]]
        %s309 = sld [smem:[#allocation5 + %s307]]
        %s310 = scalar_lea.vmem %s214, %s308 [#allocation6]
        %v311 = vld [vmem:[%s310] sm:$0x1]
        %v312 = vld [vmem:[%s310 + $0x10] sm:$0x1]
        %v313 = vld [vmem:[%s310 + $0x20] sm:$0x1]
        %v314 = vld [vmem:[%s310 + $0x30] sm:$0x1]
        %v315 = vstv %s309
        %vm316 = vcmp.eq.s32.totalorder %v261, %v315
        %v317 = vsel %vm316, 1, 0
        %vm318 = vcmp.eq.s32.totalorder %v317, 1
        %v319 = vsel %vm318, %v311, 0.0
        %v320 = vsel %vm318, %v312, 0.0
        %v321 = vsel %vm318, %v313, 0.0
        %v322 = vsel %vm318, %v314, 0.0
        %v323 = vsel %vm278, %v319, 0.0
        %324 = vadd.xlane.f32.xlu0 %v323
        %v325 = vpop.xlane.xlu0 %324
        %v326 = vsel %vm278, %v320, 0.0
        %327 = vadd.xlane.f32.xlu0 %v326
        %v328 = vpop.xlane.xlu0 %327
        %v329 = vsel %vm278, %v321, 0.0
        %330 = vadd.xlane.f32.xlu0 %v329
        %v331 = vpop.xlane.xlu0 %330
        %v332 = vsel %vm278, %v322, 0.0
        %333 = vadd.xlane.f32.xlu0 %v332
        %v334 = vpop.xlane.xlu0 %333
        %v339 = vrot.slane %v328, 7
        %v340 = vsel %vm296, %v339, %v325
        %v341 = vrot.slane %v331, 6
        %v342 = vsel %vm299, %v341, %v340
        %v343 = vrot.slane %v334, 5
        %v344 = vsel %vm302, %v343, %v342
        %vm346 = vcmask 11272
        %347 = vst.msk [vmem:[#allocation2] sm:$0xf] %vm346, %v344
        %s348 = sadd.s32 %s262, 2
        %s349 = sld [smem:[#allocation4 + %s348]]
        %s350 = sld [smem:[#allocation5 + %s348]]
        %s351 = scalar_lea.vmem %s214, %s349 [#allocation6]
        %v352 = vld [vmem:[%s351] sm:$0x1]
        %v353 = vld [vmem:[%s351 + $0x10] sm:$0x1]
        %v354 = vld [vmem:[%s351 + $0x20] sm:$0x1]
        %v355 = vld [vmem:[%s351 + $0x30] sm:$0x1]
        %v356 = vstv %s350
        %vm357 = vcmp.eq.s32.totalorder %v261, %v356
        %v358 = vsel %vm357, 1, 0
        %vm359 = vcmp.eq.s32.totalorder %v358, 1
        %v360 = vsel %vm359, %v352, 0.0
        %v361 = vsel %vm359, %v353, 0.0
        %v362 = vsel %vm359, %v354, 0.0
        %v363 = vsel %vm359, %v355, 0.0
        %v364 = vsel %vm278, %v360, 0.0
        %365 = vadd.xlane.f32.xlu0 %v364
        %v366 = vpop.xlane.xlu0 %365
        %v367 = vsel %vm278, %v361, 0.0
        %368 = vadd.xlane.f32.xlu0 %v367
        %v369 = vpop.xlane.xlu0 %368
        %v370 = vsel %vm278, %v362, 0.0
        %371 = vadd.xlane.f32.xlu0 %v370
        %v372 = vpop.xlane.xlu0 %371
        %v373 = vsel %vm278, %v363, 0.0
        %374 = vadd.xlane.f32.xlu0 %v373
        %v375 = vpop.xlane.xlu0 %374
        %v380 = vrot.slane %v369, 7
        %v381 = vsel %vm296, %v380, %v366
        %v382 = vrot.slane %v372, 6
        %v383 = vsel %vm299, %v382, %v381
        %v384 = vrot.slane %v375, 5
        %v385 = vsel %vm302, %v384, %v383
        %vm387 = vcmask 19472
        %388 = vst.msk [vmem:[#allocation2] sm:$0xf] %vm387, %v385
        %s389 = sadd.s32 %s262, 3
        %s390 = sld [smem:[#allocation4 + %s389]]
        %s391 = sld [smem:[#allocation5 + %s389]]
        %s392 = scalar_lea.vmem %s214, %s390 [#allocation6]
        %v393 = vld [vmem:[%s392] sm:$0x1]
        %v394 = vld [vmem:[%s392 + $0x10] sm:$0x1]
        %v395 = vld [vmem:[%s392 + $0x20] sm:$0x1]
        %v396 = vld [vmem:[%s392 + $0x30] sm:$0x1]
        %v397 = vstv %s391
        %vm398 = vcmp.eq.s32.totalorder %v261, %v397
        %v399 = vsel %vm398, 1, 0
        %vm400 = vcmp.eq.s32.totalorder %v399, 1
        %v401 = vsel %vm400, %v393, 0.0
        %v402 = vsel %vm400, %v394, 0.0
        %v403 = vsel %vm400, %v395, 0.0
        %v404 = vsel %vm400, %v396, 0.0
        %v405 = vsel %vm278, %v401, 0.0
        %406 = vadd.xlane.f32.xlu0 %v405
        %v407 = vpop.xlane.xlu0 %406
        %v408 = vsel %vm278, %v402, 0.0
        %409 = vadd.xlane.f32.xlu0 %v408
        %v410 = vpop.xlane.xlu0 %409
        %v411 = vsel %vm278, %v403, 0.0
        %412 = vadd.xlane.f32.xlu0 %v411
        %v413 = vpop.xlane.xlu0 %412
        %v414 = vsel %vm278, %v404, 0.0
        %415 = vadd.xlane.f32.xlu0 %v414
        %v416 = vpop.xlane.xlu0 %415
        %v421 = vrot.slane %v410, 7
        %v422 = vsel %vm296, %v421, %v407
        %v423 = vrot.slane %v413, 6
        %v424 = vsel %vm299, %v423, %v422
        %v425 = vrot.slane %v416, 5
        %v426 = vsel %vm302, %v425, %v424
        %vm428 = vcmask 27672
        %429 = vst.msk [vmem:[#allocation2] sm:$0xf] %vm428, %v426
        %s430 = sadd.s32 %s262, 4
        %s431 = sld [smem:[#allocation4 + %s430]]
        %s432 = sld [smem:[#allocation5 + %s430]]
        %s433 = scalar_lea.vmem %s214, %s431 [#allocation6]
        %v434 = vld [vmem:[%s433] sm:$0x1]
        %v435 = vld [vmem:[%s433 + $0x10] sm:$0x1]
        %v436 = vld [vmem:[%s433 + $0x20] sm:$0x1]
        %v437 = vld [vmem:[%s433 + $0x30] sm:$0x1]
        %v438 = vstv %s432
        %vm439 = vcmp.eq.s32.totalorder %v261, %v438
        %v440 = vsel %vm439, 1, 0
        %vm441 = vcmp.eq.s32.totalorder %v440, 1
        %v442 = vsel %vm441, %v434, 0.0
        %v443 = vsel %vm441, %v435, 0.0
        %v444 = vsel %vm441, %v436, 0.0
        %v445 = vsel %vm441, %v437, 0.0
        %v446 = vsel %vm278, %v442, 0.0
        %447 = vadd.xlane.f32.xlu0 %v446
        %v448 = vpop.xlane.xlu0 %447
        %v449 = vsel %vm278, %v443, 0.0
        %450 = vadd.xlane.f32.xlu0 %v449
        %v451 = vpop.xlane.xlu0 %450
        %v452 = vsel %vm278, %v444, 0.0
        %453 = vadd.xlane.f32.xlu0 %v452
        %v454 = vpop.xlane.xlu0 %453
        %v455 = vsel %vm278, %v445, 0.0
        %456 = vadd.xlane.f32.xlu0 %v455
        %v457 = vpop.xlane.xlu0 %456
        %v462 = vrot.slane %v451, 7
        %v463 = vsel %vm296, %v462, %v448
        %v464 = vrot.slane %v454, 6
        %v465 = vsel %vm299, %v464, %v463
        %v466 = vrot.slane %v457, 5
        %v467 = vsel %vm302, %v466, %v465
        %vm469 = vcmask 35872
        %470 = vst.msk [vmem:[#allocation2] sm:$0xf] %vm469, %v467
        %s471 = sadd.s32 %s262, 5
        %s472 = sld [smem:[#allocation4 + %s471]]
        %s473 = sld [smem:[#allocation5 + %s471]]
        %s474 = scalar_lea.vmem %s214, %s472 [#allocation6]
        %v475 = vld [vmem:[%s474] sm:$0x1]
        %v476 = vld [vmem:[%s474 + $0x10] sm:$0x1]
        %v477 = vld [vmem:[%s474 + $0x20] sm:$0x1]
        %v478 = vld [vmem:[%s474 + $0x30] sm:$0x1]
        %v479 = vstv %s473
        %vm480 = vcmp.eq.s32.totalorder %v261, %v479
        %v481 = vsel %vm480, 1, 0
        %vm482 = vcmp.eq.s32.totalorder %v481, 1
        %v483 = vsel %vm482, %v475, 0.0
        %v484 = vsel %vm482, %v476, 0.0
        %v485 = vsel %vm482, %v477, 0.0
        %v486 = vsel %vm482, %v478, 0.0
        %v487 = vsel %vm278, %v483, 0.0
        %488 = vadd.xlane.f32.xlu0 %v487
        %v489 = vpop.xlane.xlu0 %488
        %v490 = vsel %vm278, %v484, 0.0
        %491 = vadd.xlane.f32.xlu0 %v490
        %v492 = vpop.xlane.xlu0 %491
        %v493 = vsel %vm278, %v485, 0.0
        %494 = vadd.xlane.f32.xlu0 %v493
        %v495 = vpop.xlane.xlu0 %494
        %v496 = vsel %vm278, %v486, 0.0
        %497 = vadd.xlane.f32.xlu0 %v496
        %v498 = vpop.xlane.xlu0 %497
        %v503 = vrot.slane %v492, 7
        %v504 = vsel %vm296, %v503, %v489
        %v505 = vrot.slane %v495, 6
        %v506 = vsel %vm299, %v505, %v504
        %v507 = vrot.slane %v498, 5
        %v508 = vsel %vm302, %v507, %v506
        %vm510 = vcmask 44072
        %511 = vst.msk [vmem:[#allocation2] sm:$0xf] %vm510, %v508
        %s512 = sadd.s32 %s262, 6
        %s513 = sld [smem:[#allocation4 + %s512]]
        %s514 = sld [smem:[#allocation5 + %s512]]
        %s515 = scalar_lea.vmem %s214, %s513 [#allocation6]
        %v516 = vld [vmem:[%s515] sm:$0x1]
        %v517 = vld [vmem:[%s515 + $0x10] sm:$0x1]
        %v518 = vld [vmem:[%s515 + $0x20] sm:$0x1]
        %v519 = vld [vmem:[%s515 + $0x30] sm:$0x1]
        %v520 = vstv %s514
        %vm521 = vcmp.eq.s32.totalorder %v261, %v520
        %v522 = vsel %vm521, 1, 0
        %vm523 = vcmp.eq.s32.totalorder %v522, 1
        %v524 = vsel %vm523, %v516, 0.0
        %v525 = vsel %vm523, %v517, 0.0
        %v526 = vsel %vm523, %v518, 0.0
        %v527 = vsel %vm523, %v519, 0.0
        %v528 = vsel %vm278, %v524, 0.0
        %529 = vadd.xlane.f32.xlu0 %v528
        %v530 = vpop.xlane.xlu0 %529
        %v531 = vsel %vm278, %v525, 0.0
        %532 = vadd.xlane.f32.xlu0 %v531
        %v533 = vpop.xlane.xlu0 %532
        %v534 = vsel %vm278, %v526, 0.0
        %535 = vadd.xlane.f32.xlu0 %v534
        %v536 = vpop.xlane.xlu0 %535
        %v537 = vsel %vm278, %v527, 0.0
        %538 = vadd.xlane.f32.xlu0 %v537
        %v539 = vpop.xlane.xlu0 %538
        %v544 = vrot.slane %v533, 7
        %v545 = vsel %vm296, %v544, %v530
        %v546 = vrot.slane %v536, 6
        %v547 = vsel %vm299, %v546, %v545
        %v548 = vrot.slane %v539, 5
        %v549 = vsel %vm302, %v548, %v547
        %vm551 = vcmask 52272
        %552 = vst.msk [vmem:[#allocation2] sm:$0xf] %vm551, %v549
        %s553 = sadd.s32 %s262, 7
        %s554 = sld [smem:[#allocation4 + %s553]]
        %s555 = sld [smem:[#allocation5 + %s553]]
        %s556 = scalar_lea.vmem %s214, %s554 [#allocation6]
        %v557 = vld [vmem:[%s556] sm:$0x1]
        %v558 = vld [vmem:[%s556 + $0x10] sm:$0x1]
        %v559 = vld [vmem:[%s556 + $0x20] sm:$0x1]
        %v560 = vld [vmem:[%s556 + $0x30] sm:$0x1]
        %v561 = vstv %s555
        %vm562 = vcmp.eq.s32.totalorder %v261, %v561
        %v563 = vsel %vm562, 1, 0
        %vm564 = vcmp.eq.s32.totalorder %v563, 1
        %v565 = vsel %vm564, %v557, 0.0
        %v566 = vsel %vm564, %v558, 0.0
        %v567 = vsel %vm564, %v559, 0.0
        %v568 = vsel %vm564, %v560, 0.0
        %v569 = vsel %vm278, %v565, 0.0
        %570 = vadd.xlane.f32.xlu0 %v569
        %v571 = vpop.xlane.xlu0 %570
        %v572 = vsel %vm278, %v566, 0.0
        %573 = vadd.xlane.f32.xlu0 %v572
        %v574 = vpop.xlane.xlu0 %573
        %v575 = vsel %vm278, %v567, 0.0
        %576 = vadd.xlane.f32.xlu0 %v575
        %v577 = vpop.xlane.xlu0 %576
        %v578 = vsel %vm278, %v568, 0.0
        %579 = vadd.xlane.f32.xlu0 %v578
        %v580 = vpop.xlane.xlu0 %579
        %v585 = vrot.slane %v574, 7
        %v586 = vsel %vm296, %v585, %v571
        %v587 = vrot.slane %v577, 6
        %v588 = vsel %vm299, %v587, %v586
        %v589 = vrot.slane %v580, 5
        %v590 = vsel %vm302, %v589, %v588
        %vm592 = vcmask 60472
        %593 = vst.msk [vmem:[#allocation2] sm:$0xf] %vm592, %v590
        %v594 = vld [vmem:[#allocation2] sm:$0xf]
        %v595 = vld [vmem:[%s258] sm:$0x1]
        %v596 = vld [vmem:[%s224] sm:$0xf]
        %v598 = vperm.slane %v595, 0
        %v600 = vmul.f32 %v594, %v598
        %v601 = vmul.f32 %v596, %v598
        %v602 = vsub.f32 %v600, %v601
        %v603 = vand.u32 2147483647, %v602
        %vm604 = vcmask 1043456
        %v605 = vsel %vm604, %v603, 0.0
        %v606 = vrot.slane %v605, 4
        %v607 = vadd.f32 %v605, %v606
        %v608 = vrot.slane %v607, 2
        %v609 = vadd.f32 %v607, %v608
        %v610 = vrot.slane %v609, 1
        %v611 = vadd.f32 %v609, %v610
        %612 = vst [vmem:[%s255] sm:$0x1] %v611
        %v613 = vmul.f32 %v595, 4.0
        %614 = vst [vmem:[%s255 + $0x1] sm:$0x1] %v613
        %s615 = sand.u32 %s124, 1
        %s616 = scalar_lea.sflag [#allocation8], %s615
        %s617 = sand.u32 %s124, 1
        %s618 = smul.addr %s617, 2
        %s619 = scalar_lea.vmem [#allocation11], %s618
        // Predicated region
        $region41: #{tpu_custom_call.1} parent=31 // pred_check
          %p620 = pneg %p134
        $region42: #{tpu_custom_call.1} parent=31 // pred_check_branch
          %622 = sbr.rel (%p620) target = $region44
        $region43: #{tpu_custom_call.1} parent=31 // pred_region
          %624 = vsyncadd %s616, 0
          %s625 = smul.addr %s38, 2
          %s626 = scalar_lea.hbm %s5, %s625
          %s628 = sshll.u32 %s619, 4
          %s629 = int_to_ptr.vmem [resolvable:$true] %s628
          %s630 = sshll.u32 %s626, 4
          %s631 = int_to_ptr.hbm [resolvable:$true] %s630
          %633 = dma.vmem_to_hbm [thread:$0]  %s629, 32, %s631, %s616
        $region44: #{tpu_custom_call.1} parent=31 // pred_fallthru
          _
      $region32: #{tpu_custom_call.1} parent=5 // pred_fallthru
        _
      %p634 = scmp.le.s32.totalorder 2, %s33
      // Predicated region
      $region45: #{tpu_custom_call.1} parent=5 // pred_check
        %p635 = pneg %p634
      $region46: #{tpu_custom_call.1} parent=5 // pred_check_branch
        %637 = sbr.rel (%p635) target = $region48
      $region47: #{tpu_custom_call.1} parent=5 // pred_region
        %s638 = ssub.s32 %s33, 2
        // Predicated region
        $region49: #{tpu_custom_call.1} parent=47 // pred_check
          %p639 = pneg %p140
        $region50: #{tpu_custom_call.1} parent=47 // pred_check_branch
          %641 = sbr.rel (%p639) target = $region52
        $region51: #{tpu_custom_call.1} parent=47 // pred_region
          %s642 = sand.u32 %s125, 1
          %s643 = scalar_lea.sflag [#allocation8], %s642
          %s644 = sand.u32 %s125, 1
          %s645 = smul.addr %s644, 2
          %s646 = scalar_lea.vmem [#allocation11], %s645
          %648 = dma.done %s643, 32
        $region52: #{tpu_custom_call.1} parent=47 // pred_fallthru
          _
      $region48: #{tpu_custom_call.1} parent=5 // pred_fallthru
        _
    $region6: #{tpu_custom_call.1} parent=1 // loop_footer
      %s37 = sadd.s32 1, %s33
    $region7: #{tpu_custom_call.1} parent=1 // loop_footer_branch
      %32 = sbr.rel target = $region3
    $region8: #{tpu_custom_call.1} parent=1 // loop_exit
      _
    %649 = vsyncpa [#allocation7], 1
    %s650 = scalar_lea.sflag [#allocation7], 1
    %651 = vsyncpa %s650, 1
    %652 = vsyncpa [#allocation10], 1
    %s653 = scalar_lea.sflag [#allocation10], 1
    %654 = vsyncpa %s653, 1
    %655 = vsyncpa [#allocation8], 1
    %s656 = scalar_lea.sflag [#allocation8], 1
    %657 = vsyncpa %s656, 1

</llo_original>
